<compile_context>
chip_gen: v7x
topology: tpu7x:2x2x1
jax: 0.10.0
libtpu: 0.0.40
codegen_flags: <defaults>
</compile_context>

<pallas_src>
import functools

import jax
import jax.numpy as jnp
from jax import lax
from jax.experimental import pallas as pl
from jax.experimental.pallas import tpu as pltpu

EPS = 1e-6  # matches F.pairwise_distance default eps (added to the difference)


def _contrastive_loss_kernel(stats_ref, o1_ref, o2_ref, loss_ref, acc_ref, *,
                             n_true, tile_rows, margin, needs_mask):
    # stats_ref : SMEM (1,) f32   -> [mean(label)]
    # o1_ref/o2_ref : VMEM (TN, D) tiles of the two embeddings
    # loss_ref : VMEM (1, 1) f32 output (same block every grid step -> resident)
    # acc_ref  : VMEM (1, 1) f32 scratch accumulator of sum_i(d_i)
    i = pl.program_id(0)

    @pl.when(i == 0)
    def _init():
        acc_ref[...] = jnp.zeros_like(acc_ref)

    # Upcast on the loaded tile (free on the VPU) instead of materializing f32 copies in HBM.
    o1 = o1_ref[...].astype(jnp.float32)
    o2 = o2_ref[...].astype(jnp.float32)
    diff = o1 - o2 + EPS                                          # (TN, D) VPU elementwise
    d_row = jnp.sqrt(jnp.sum(diff * diff, axis=-1, keepdims=True))  # (TN, 1) per-row distance

    if needs_mask:
        # Zero out rows that only exist because the batch was padded to a tile multiple.
        row_ids = i * tile_rows + lax.broadcasted_iota(jnp.int32, (tile_rows, 1), 0)
        d_row = jnp.where(row_ids < n_true, d_row, 0.0)

    acc_ref[...] += jnp.sum(d_row, keepdims=True)                 # (1, 1) running sum of distances

    # Scalar epilogue (cheap enough to run every step; the last grid step's value is what
    # gets written back because the output block index never changes).
    mean_lab = stats_ref[0]                                       # scalar read from SMEM
    ed = acc_ref[...] * (16.0 / n_true)                           # (1, 1): mean(d) * 16
    hinge = jnp.maximum(margin - ed, 0.0)
    loss_ref[...] = (1.0 - mean_lab) * ed * ed + mean_lab * hinge * hinge


def contrastive_loss(output1, output2, label, *, margin=1.0, tile_rows=None):
    n, d = output1.shape
    assert output2.shape == (n, d)

    # Collapse the label term to its mean (exact, since ed is a scalar).
    mean_label = jnp.mean(label.astype(jnp.float32)).reshape(1)

    if tile_rows is None:
        # ~8 MiB of double-buffered input VMEM: 2 inputs * 2 buffers * TN * D * 4B.
        # Safe under every generation's default scoped-VMEM limit (v5e 16 MiB, v6e/v7x 32 MiB).
        budget_rows = (8 * 1024 * 1024) // max(1, 2 * 2 * d * 4)
        tile_rows = int(max(8, min(1024, (budget_rows // 8) * 8)))
    else:
        tile_rows = int(max(8, (tile_rows // 8) * 8))

    if n <= tile_rows:
        tn = n                      # single tile == full array, no (8,) divisibility issue
        n_pad = n
        o1, o2 = output1, output2
    else:
        tn = tile_rows
        n_pad = ((n + tn - 1) // tn) * tn
        pad = n_pad - n
        if pad:
            o1 = jnp.pad(output1, ((0, pad), (0, 0)))
            o2 = jnp.pad(output2, ((0, pad), (0, 0)))
        else:
            o1, o2 = output1, output2

    num_tiles = n_pad // tn
    needs_mask = n_pad != n

    kernel = functools.partial(
        _contrastive_loss_kernel,
        n_true=n,
        tile_rows=tn,
        margin=float(margin),
        needs_mask=needs_mask,
    )

    out = pl.pallas_call(
        kernel,
        out_shape=jax.ShapeDtypeStruct((1, 1), jnp.float32),
        grid=(num_tiles,),
        in_specs=[
            pl.BlockSpec(memory_space=pltpu.MemorySpace.SMEM),    # mean(label), (1,) f32
            pl.BlockSpec((tn, d), lambda i: (i, 0)),              # output1 batch tile
            pl.BlockSpec((tn, d), lambda i: (i, 0)),              # output2 batch tile
        ],
        out_specs=pl.BlockSpec((1, 1), lambda i: (0, 0)),         # resident scalar output
        scratch_shapes=[pltpu.VMEM((1, 1), jnp.float32)],         # sum_i(d_i) accumulator
        compiler_params=pltpu.CompilerParams(
            dimension_semantics=("arbitrary",),                   # sequential reduction over batch
        ),
    )(mean_label, o1, o2)
    return out[0, 0]


def _reference(output1, output2, label, margin=1.0):
    # Pure-JAX replica of the PyTorch forward for verification.
    dist = jnp.sqrt(jnp.sum((output1 - output2 + EPS) ** 2, axis=-1, keepdims=True))
    ed = jnp.mean(dist) * 16.0
    lab = label.reshape(-1, 1).astype(jnp.float32)
    return jnp.mean((1.0 - lab) * ed ** 2 + lab * jnp.maximum(margin - ed, 0.0) ** 2)


if __name__ == "__main__":
    key = jax.random.PRNGKey(0)
    k1, k2, k3 = jax.random.split(key, 3)

    # Small shapes consistent with the module: batch=8, hidden=32.
    N, D = 8, 32
    output1 = jax.random.normal(k1, (N, D), dtype=jnp.float32)
    output2 = jax.random.normal(k2, (N, D), dtype=jnp.float32)
    label = jax.random.bernoulli(k3, 0.5, (N,)).astype(jnp.float32)

    loss = jax.block_until_ready(contrastive_loss(output1, output2, label))
    ref = _reference(output1, output2, label)
    assert jnp.allclose(loss, ref, rtol=1e-5, atol=1e-5), (loss, ref)

    # Second check exercising the tiled/accumulator path with batch padding + row masking.
    k4, k5, k6 = jax.random.split(jax.random.PRNGKey(1), 3)
    N2, D2 = 24, 32                      # forced tile_rows=16 -> 2 grid steps, 8 padded rows
    o1b = jax.random.normal(k4, (N2, D2), dtype=jnp.float32)
    o2b = jax.random.normal(k5, (N2, D2), dtype=jnp.float32)
    labb = jax.random.bernoulli(k6, 0.5, (N2,)).astype(jnp.float32)

    loss2 = jax.block_until_ready(contrastive_loss(o1b, o2b, labb, tile_rows=16))
    ref2 = _reference(o1b, o2b, labb)
    assert jnp.allclose(loss2, ref2, rtol=1e-5, atol=1e-5), (loss2, ref2)

    print("KERNEL_OK")
</pallas_src>

<mosaic_0001>
module attributes {stable_mosaic.version = 11 : i64} {
  func.func @_contrastive_loss_kernel(%arg0: i32, %arg1: memref<1xf32, #tpu.memory_space<smem>>, %arg2: memref<8x32xf32, #tpu.memory_space<vmem>>, %arg3: memref<8x32xf32, #tpu.memory_space<vmem>>, %arg4: memref<1x1xf32, #tpu.memory_space<vmem>>, %arg5: memref<1x1xf32, #tpu.memory_space<vmem>>) attributes {dimension_semantics = [#tpu.dimension_semantics<arbitrary>], iteration_bounds = array<i64: 1>, scalar_prefetch = 0 : i64, scratch_operands = 1 : i64, tpu.core_type = #tpu.core_type<tc>, window_params = [{transform_indices = @transform_0, window_bounds = array<i64: 1>}, {transform_indices = @transform_1, window_bounds = array<i64: 8, 32>}, {transform_indices = @transform_2, window_bounds = array<i64: 8, 32>}, {pipeline_mode = #tpu.pipeline_mode<synchronous>, transform_indices = @transform_3, window_bounds = array<i64: 1, 1>}]} {
    %c0_i32 = arith.constant 0 : i32
    %0 = arith.cmpi eq, %arg0, %c0_i32 : i32
    %1 = arith.extui %0 : i1 to i32
    %c0_i32_0 = arith.constant 0 : i32
    %2 = arith.cmpi ne, %1, %c0_i32_0 : i32
    scf.if %2 {
      %cst_19 = arith.constant 0.000000e+00 : f32
      %37 = vector.broadcast %cst_19 : f32 to vector<1x1xf32>
      %c0_20 = arith.constant 0 : index
      %c0_21 = arith.constant 0 : index
      %38 = vector.load %arg5[%c0_20, %c0_21] : memref<1x1xf32, #tpu.memory_space<vmem>>, vector<1x1xf32>
      tpu.vector_store %arg5[%c0_20, %c0_21], %37 {strides = array<i32>} : memref<1x1xf32, #tpu.memory_space<vmem>>, vector<1x1xf32>,
    } else {
    }
    %c0 = arith.constant 0 : index
    %c0_1 = arith.constant 0 : index
    %3 = vector.load %arg2[%c0, %c0_1] : memref<8x32xf32, #tpu.memory_space<vmem>>, vector<8x32xf32>
    %c0_2 = arith.constant 0 : index
    %c0_3 = arith.constant 0 : index
    %4 = vector.load %arg3[%c0_2, %c0_3] : memref<8x32xf32, #tpu.memory_space<vmem>>, vector<8x32xf32>
    %5 = arith.subf %3, %4 : vector<8x32xf32>
    %cst = arith.constant 9.99999997E-7 : f32
    %6 = vector.broadcast %cst : f32 to vector<8x32xf32>
    %7 = arith.addf %5, %6 : vector<8x32xf32>
    %8 = arith.mulf %7, %7 : vector<8x32xf32>
    %cst_4 = arith.constant dense<0.000000e+00> : vector<8xf32>
    %9 = vector.multi_reduction <add>, %8, %cst_4 [1] : vector<8x32xf32> to vector<8xf32>
    %10 = vector.shape_cast %9 : vector<8xf32> to vector<8x1xf32>
    %11 = math.sqrt %10 : vector<8x1xf32>
    %c0_5 = arith.constant 0 : index
    %c0_6 = arith.constant 0 : index
    %12 = vector.load %arg5[%c0_5, %c0_6] : memref<1x1xf32, #tpu.memory_space<vmem>>, vector<1x1xf32>
    %13 = vector.shape_cast %11 : vector<8x1xf32> to vector<1x8x1xf32>
    %cst_7 = arith.constant dense<0.000000e+00> : vector<1xf32>
    %14 = vector.multi_reduction <add>, %13, %cst_7 [1, 2] : vector<1x8x1xf32> to vector<1xf32>
    %15 = vector.shape_cast %14 : vector<1xf32> to vector<1x1x1xf32>
    %16 = vector.extract %15[0, 0, 0] : f32 from vector<1x1x1xf32>
    %17 = vector.broadcast %16 : f32 to vector<1x1xf32>
    %18 = arith.addf %12, %17 : vector<1x1xf32>
    %c0_8 = arith.constant 0 : index
    %c0_9 = arith.constant 0 : index
    %19 = vector.load %arg5[%c0_8, %c0_9] : memref<1x1xf32, #tpu.memory_space<vmem>>, vector<1x1xf32>
    tpu.vector_store %arg5[%c0_8, %c0_9], %18 {strides = array<i32>} : memref<1x1xf32, #tpu.memory_space<vmem>>, vector<1x1xf32>,
    %c0_10 = arith.constant 0 : index
    %20 = memref.load %arg1[%c0_10] : memref<1xf32, #tpu.memory_space<smem>>
    %c0_11 = arith.constant 0 : index
    %c0_12 = arith.constant 0 : index
    %21 = vector.load %arg5[%c0_11, %c0_12] : memref<1x1xf32, #tpu.memory_space<vmem>>, vector<1x1xf32>
    %cst_13 = arith.constant 2.000000e+00 : f32
    %22 = vector.broadcast %cst_13 : f32 to vector<1x1xf32>
    %23 = arith.mulf %21, %22 : vector<1x1xf32>
    %cst_14 = arith.constant 1.000000e+00 : f32
    %24 = vector.broadcast %cst_14 : f32 to vector<1x1xf32>
    %25 = arith.subf %24, %23 : vector<1x1xf32>
    %cst_15 = arith.constant 0.000000e+00 : f32
    %26 = vector.broadcast %cst_15 : f32 to vector<1x1xf32>
    %27 = arith.maximumf %25, %26 : vector<1x1xf32>
    %cst_16 = arith.constant 1.000000e+00 : f32
    %28 = arith.subf %cst_16, %20 : f32
    %29 = vector.broadcast %28 : f32 to vector<1x1xf32>
    %30 = arith.mulf %29, %23 : vector<1x1xf32>
    %31 = arith.mulf %30, %23 : vector<1x1xf32>
    %32 = vector.broadcast %20 : f32 to vector<1x1xf32>
    %33 = arith.mulf %32, %27 : vector<1x1xf32>
    %34 = arith.mulf %33, %27 : vector<1x1xf32>
    %35 = arith.addf %31, %34 : vector<1x1xf32>
    %c0_17 = arith.constant 0 : index
    %c0_18 = arith.constant 0 : index
    %36 = vector.load %arg4[%c0_17, %c0_18] : memref<1x1xf32, #tpu.memory_space<vmem>>, vector<1x1xf32>
    tpu.vector_store %arg4[%c0_17, %c0_18], %35 {strides = array<i32>} : memref<1x1xf32, #tpu.memory_space<vmem>>, vector<1x1xf32>,
    return
  }
  func.func @transform_0(%arg0: i32) -> i32 {
    %c0_i32 = arith.constant 0 : i32
    %c0_i32_0 = arith.constant 0 : i32
    return %c0_i32 : i32
  }
  func.func @transform_1(%arg0: i32) -> (i32, i32) {
    %c0_i32 = arith.constant 0 : i32
    %c0_i32_0 = arith.constant 0 : i32
    return %arg0, %c0_i32 : i32, i32
  }
  func.func @transform_2(%arg0: i32) -> (i32, i32) {
    %c0_i32 = arith.constant 0 : i32
    %c0_i32_0 = arith.constant 0 : i32
    return %arg0, %c0_i32 : i32, i32
  }
  func.func @transform_3(%arg0: i32) -> (i32, i32) {
    %c0_i32 = arith.constant 0 : i32
    %c0_i32_0 = arith.constant 0 : i32
    %c0_i32_1 = arith.constant 0 : i32
    return %c0_i32, %c0_i32_0 : i32, i32
  }
}

</mosaic_0001>

<llo_original>
// kernel: tpu_custom_call.1
$region0: #{tpu_custom_call.1}
  #allocation0 [shape = 'u32[]', space=smem, size = 0x4, offset = 0x4, fixed_abs, tag = 'smem constant byte address 0x4 - core index']
  #allocation1 [shape = 'u32[144,128]{1,0:T(1,128)}', space=vmem, size = 0x12000, scoped, tag = 'internal scratch']
  #allocation2 [shape = 'f32[1,1]{1,0:T(1,128)}', space=vmem, size = 0x200, scoped, tag = 'scratch operand']
  #allocation3 [shape = 'f32[1]{0:T(128)S(6)}', space=smem, size = 0x200, scoped, tag = 'scoped memory for tpu_custom_call.1']
  %s0 = inlined_call_operand.<no memory space> [shape: f32[1], index: 0, kind: input, shape index: {}]
  %s1 = inlined_call_operand.hbm [shape: f32[8,32], index: 1, kind: input, shape index: {}]
  %s2 = inlined_call_operand.hbm [shape: f32[8,32], index: 2, kind: input, shape index: {}]
  %s3 = inlined_call_operand.hbm [shape: f32[1,1], index: 3, kind: output, shape index: {}]
  %s4 = sld [smem:[#allocation0]]
  $region34: #{tpu_custom_call.1} parent=0
    _
  %s6 = ssub.s32 1, %s4
  %s7 = scalar_select 0, %s6, %s4
  %8 = sst [smem:[#allocation3]] %s0
  $region1: #{tpu_custom_call.1} parent=0
    #allocation4 [shape = 'u8[4096]{0}', space=vmem, size = 0x1000, scoped, tag = 'input window, operand 1, single buffered']
    #allocation5 [shape = 's32[1]{0}', space=sflag, size = 0x4, scoped, tag = 'scoped memory for tpu_custom_call.1']
    #allocation6 [shape = 's32[1]{0}', space=sflag, size = 0x4, scoped, tag = 'scoped memory for tpu_custom_call.1']
    #allocation7 [shape = 'u8[4096]{0}', space=vmem, size = 0x1000, scoped, tag = 'input window, operand 2, single buffered']
    #allocation8 [shape = 's32[1]{0}', space=sflag, size = 0x4, scoped, tag = 'scoped memory for tpu_custom_call.1']
    #allocation9 [shape = 'u8[512]{0}', space=vmem, size = 0x400, scoped, tag = 'output window, operand 0, single buffered']
    %9 = vsyncpa [#allocation5], 0
    %10 = vsyncpa [#allocation8], 0
    %11 = vsyncpa [#allocation6], 0
    // Predicated region
    $region2: #{tpu_custom_call.1} parent=1 // pred_check
      _
    $region3: #{tpu_custom_call.1} parent=1 // pred_check_branch
      %13 = sbr.rel (0) target = $region5
    $region4: #{tpu_custom_call.1} parent=1 // pred_region
      _
    $region5: #{tpu_custom_call.1} parent=1 // pred_fallthru
      _
    // Predicated region
    $region6: #{tpu_custom_call.1} parent=1 // pred_check
      _
    $region7: #{tpu_custom_call.1} parent=1 // pred_check_branch
      %15 = sbr.rel (0) target = $region9
    $region8: #{tpu_custom_call.1} parent=1 // pred_region
      %s17 = ssub.s32 128, 128
      %18 = vsyncadd [#allocation5], %s17
      %s20 = sshll.u32 [#allocation4], 4
      %s21 = int_to_ptr.vmem [resolvable:$true] %s20
      %23 = dma.hbm_to_vmem [thread:$0]  %s1, 128, %s21, [#allocation5]
    $region9: #{tpu_custom_call.1} parent=1 // pred_fallthru
      _
    // Predicated region
    $region10: #{tpu_custom_call.1} parent=1 // pred_check
      _
    $region11: #{tpu_custom_call.1} parent=1 // pred_check_branch
      %25 = sbr.rel (0) target = $region13
    $region12: #{tpu_custom_call.1} parent=1 // pred_region
      %s27 = ssub.s32 128, 128
      %28 = vsyncadd [#allocation8], %s27
      %s30 = sshll.u32 [#allocation7], 4
      %s31 = int_to_ptr.vmem [resolvable:$true] %s30
      %33 = dma.hbm_to_vmem [thread:$0]  %s2, 128, %s31, [#allocation8]
    $region13: #{tpu_custom_call.1} parent=1 // pred_fallthru
      _
    // Predicated region
    $region14: #{tpu_custom_call.1} parent=1 // pred_check
      _
    $region15: #{tpu_custom_call.1} parent=1 // pred_check_branch
      %35 = sbr.rel (0) target = $region17
    $region16: #{tpu_custom_call.1} parent=1 // pred_region
      %36 = dma.done [#allocation5], 128
    $region17: #{tpu_custom_call.1} parent=1 // pred_fallthru
      _
    // Predicated region
    $region18: #{tpu_custom_call.1} parent=1 // pred_check
      _
    $region19: #{tpu_custom_call.1} parent=1 // pred_check_branch
      %38 = sbr.rel (0) target = $region21
    $region20: #{tpu_custom_call.1} parent=1 // pred_region
      %39 = dma.done [#allocation8], 128
    $region21: #{tpu_custom_call.1} parent=1 // pred_fallthru
      _
    %p40 = scmp.eq.s32.totalorder 0, 0
    // Predicated region
    $region22: #{tpu_custom_call.1} parent=1 // pred_check
      %p41 = pneg %p40
    $region23: #{tpu_custom_call.1} parent=1 // pred_check_branch
      %43 = sbr.rel (%p41) target = $region25
    $region24: #{tpu_custom_call.1} parent=1 // pred_region
      %vm44 = vcmask 0
      %45 = vst.msk [vmem:[#allocation2] sm:$0x1] %vm44, 0.0
    $region25: #{tpu_custom_call.1} parent=1 // pred_fallthru
      _
    %v46 = vld [vmem:[#allocation4] sm:$0xff]
    %v47 = vld [vmem:[#allocation7] sm:$0xff]
    %v48 = vsub.f32 %v46, %v47
    %v49 = vadd.f32 %v48, 1e-06
    %v50 = vmul.f32 %v49, %v49
    %vm51 = vcmask 261120
    %v52 = vsel %vm51, %v50, 0.0
    %53 = vadd.xlane.f32.xlu0 %v52
    %v54 = vpop.xlane.xlu0 %53
    %v55 = vrsqrt.pop %v54
    %v56 = vmul.f32 %v54, %v55
    %vm57 = vcmp.eq.f32.partialorder %v54, inf
    %v58 = vsel %vm57, %v54, %v56
    %vm59 = vcmp.eq.f32.partialorder %v54, 0.0
    %v60 = vand.u32 %v54, 2147483648
    %v61 = vsel %vm59, %v60, %v58
    %v62 = vld [vmem:[#allocation2] sm:$0x1]
    %vm63 = vcmask 7168
    %v64 = vsel %vm63, %v61, 0.0
    %65 = vadd.xlane.f32.xlu0 %v64
    %v66 = vpop.xlane.xlu0 %65
    %v67 = vrot.slane %v66, 4
    %v68 = vadd.f32 %v66, %v67
    %v69 = vrot.slane %v68, 2
    %v70 = vadd.f32 %v68, %v69
    %v71 = vrot.slane %v70, 1
    %v72 = vadd.f32 %v70, %v71
    %s73 = vtos %v72
    %v74 = vstv %s73
    %v75 = vadd.f32 %v62, %v74
    %vm76 = vcmask 0
    %77 = vst.msk [vmem:[#allocation2] sm:$0x1] %vm76, %v75
    %s78 = sld [smem:[#allocation3]]
    %v79 = vld [vmem:[#allocation2] sm:$0x1]
    %v80 = vmul.f32 %v79, 2.0
    %v81 = vsub.f32 1.0, %v80
    %v82 = vmax.f32 %v81, 0.0
    %s83 = ssub.f32 1.0, %s78
    %v84 = vstv %s83
    %v85 = vmul.f32 %v84, %v80
    %v86 = vmul.f32 %v85, %v80
    %v87 = vstv %s78
    %v88 = vmul.f32 %v87, %v82
    %v89 = vmul.f32 %v88, %v82
    %v90 = vadd.f32 %v86, %v89
    %91 = vst.msk [vmem:[#allocation9] sm:$0x1] %vm76, %v90
    // Predicated region
    $region26: #{tpu_custom_call.1} parent=1 // pred_check
      _
    $region27: #{tpu_custom_call.1} parent=1 // pred_check_branch
      %93 = sbr.rel (0) target = $region29
    $region28: #{tpu_custom_call.1} parent=1 // pred_region
      %s95 = ssub.s32 16, 16
      %96 = vsyncadd [#allocation6], %s95
      %s98 = sshll.u32 [#allocation9], 4
      %s99 = int_to_ptr.vmem [resolvable:$true] %s98
      %101 = dma.vmem_to_hbm [thread:$0]  %s99, 16, %s3, [#allocation6]
    $region29: #{tpu_custom_call.1} parent=1 // pred_fallthru
      _
    // Predicated region
    $region30: #{tpu_custom_call.1} parent=1 // pred_check
      _
    $region31: #{tpu_custom_call.1} parent=1 // pred_check_branch
      %103 = sbr.rel (0) target = $region33
    $region32: #{tpu_custom_call.1} parent=1 // pred_region
      %104 = dma.done [#allocation6], 16
    $region33: #{tpu_custom_call.1} parent=1 // pred_fallthru
      _
    %105 = vsyncpa [#allocation5], 1
    %106 = vsyncpa [#allocation8], 1
    %107 = vsyncpa [#allocation6], 1

</llo_original>
